<compile_context>
chip_gen: v7x
topology: tpu7x:2x2x1
jax: 0.10.0
libtpu: 0.0.40
codegen_flags: <defaults>
</compile_context>

<pallas_src>
import functools

import jax
import jax.numpy as jnp
from jax.experimental import pallas as pl
from jax.experimental.pallas import tpu as pltpu


def _gcn_kernel(*refs, dropout_p, use_dropout):
    # Ref order: [seed (SMEM, only when use_dropout)], x, adj, w1, b1, w2, b2, out
    if use_dropout:
        seed_ref, x_ref, adj_ref, w1_ref, b1_ref, w2_ref, b2_ref, out_ref = refs
    else:
        x_ref, adj_ref, w1_ref, b1_ref, w2_ref, b2_ref, out_ref = refs

    x = x_ref[...]        # (N, F)
    adj = adj_ref[...]    # (N, N)

    # ---- layer 1: relu(adj @ (x @ W1) + b1) -------------------------------
    s1 = jnp.dot(x, w1_ref[...], preferred_element_type=jnp.float32)       # (N, H)
    h = jnp.dot(adj, s1, preferred_element_type=jnp.float32) + b1_ref[...]  # (N, H)
    h = jnp.maximum(h, 0.0)

    # ---- dropout (training mode only; eval mode is identity) --------------
    if use_dropout:
        pltpu.prng_seed(seed_ref[0])
        bits = pltpu.prng_random_bits(h.shape)                   # uint32
        u = (bits >> 9).astype(jnp.float32) * (1.0 / (1 << 23))  # uniform [0,1)
        keep = u >= dropout_p
        h = jnp.where(keep, h * (1.0 / (1.0 - dropout_p)), 0.0)

    # ---- layer 2: adj @ (h @ W2) + b2 --------------------------------------
    s2 = jnp.dot(h, w2_ref[...], preferred_element_type=jnp.float32)        # (N, E)
    out = jnp.dot(adj, s2, preferred_element_type=jnp.float32) + b2_ref[...]

    out_ref[...] = out.astype(out_ref.dtype)  # single cast on the final result


def preprocess_gcn_forward(x, adj, params, *, dropout=0.0, training=False, seed=0):
    """Pallas implementation of PreProcess_Gcn.forward.

    x: (N, fea), adj: (N, N) (dense, already normalized), params from
    init_preprocess_gcn_params. Returns (N, emb).

    NOTE: this is a single-invocation, full-array-in-VMEM kernel, which is the
    right plan for small/medium graphs. For large N (adj is N x N) the outputs
    must be tiled with an (i, j, k) grid, f32 VMEM accumulators, and
    dimension_semantics=("parallel","parallel","arbitrary") — especially on
    v7x with its 64 MiB VMEM and 2 TensorCores per chip.
    """
    n, f = x.shape
    assert adj.shape == (n, n), "adj must be (N, N)"
    w1, b1 = params["gc1"]
    w2, b2 = params["gc2"]
    assert w1.shape[0] == f, "gc1 weight fan-in must match feature size"
    h = w1.shape[1]
    assert w2.shape[0] == h, "gc2 weight fan-in must match hidden size"
    e = w2.shape[1]

    # Biases as (1, dim) rows so they broadcast cleanly over the node axis.
    b1_2d = b1.reshape(1, h)
    b2_2d = b2.reshape(1, e)

    use_dropout = bool(training) and float(dropout) > 0.0

    vmem = pl.BlockSpec(memory_space=pltpu.MemorySpace.VMEM)
    in_specs = [vmem, vmem, vmem, vmem, vmem, vmem]
    args = [x, adj, w1, b1_2d, w2, b2_2d]
    if use_dropout:
        in_specs = [pl.BlockSpec(memory_space=pltpu.MemorySpace.SMEM)] + in_specs
        args = [jnp.asarray([seed], dtype=jnp.int32)] + args

    kernel = functools.partial(
        _gcn_kernel, dropout_p=float(dropout), use_dropout=use_dropout
    )

    # Gridless call: full arrays are DMA'd once into VMEM, no 1-step pipeline.
    return pl.pallas_call(
        kernel,
        out_shape=jax.ShapeDtypeStruct((n, e), x.dtype),
        in_specs=in_specs,
        out_specs=vmem,
    )(*args)


def init_preprocess_gcn_params(key, fea_size, hid_size, emb_size):
    """Deterministic init mirroring GraphConvolution's uniform(+-1/sqrt(out)) init."""
    k1, k2, k3, k4 = jax.random.split(key, 4)

    def gc(kw, kb, fan_in, fan_out):
        stdv = float(1.0 / jnp.sqrt(jnp.float32(fan_out)))
        w = jax.random.uniform(kw, (fan_in, fan_out), jnp.float32, -stdv, stdv)
        b = jax.random.uniform(kb, (fan_out,), jnp.float32, -stdv, stdv)
        return w, b

    return {
        "gc1": gc(k1, k2, fea_size, hid_size),
        "gc2": gc(k3, k4, hid_size, emb_size),
    }


if __name__ == "__main__":
    # Small shapes consistent with the module. emb_size=128 keeps the output
    # last dim lane-dense (unmasked stores), per the perf review.
    fea_size, hid_size, emb_size = 32, 32, 128
    num_nodes = 16
    dropout_p = 0.5  # only active in training mode; example runs eval (identity)

    key = jax.random.PRNGKey(0)
    kx, ka, kp = jax.random.split(key, 3)

    x = jax.random.normal(kx, (num_nodes, fea_size), dtype=jnp.float32)

    # Symmetric normalized adjacency with self-loops (typical GCN preprocessing).
    raw = jax.random.uniform(ka, (num_nodes, num_nodes))
    a = (raw + raw.T) * 0.5
    a = (a > 0.5).astype(jnp.float32) + jnp.eye(num_nodes, dtype=jnp.float32)
    a = jnp.minimum(a, 1.0)
    d_inv_sqrt = 1.0 / jnp.sqrt(jnp.sum(a, axis=1))
    adj = a * d_inv_sqrt[:, None] * d_inv_sqrt[None, :]

    params = init_preprocess_gcn_params(kp, fea_size, hid_size, emb_size)

    # Run the fused Pallas kernel (eval mode: dropout is identity, matching
    # F.dropout with training=False).
    out = preprocess_gcn_forward(
        x, adj, params, dropout=dropout_p, training=False
    )
    jax.block_until_ready(out)

    # Plain-JAX reference for correctness.
    w1, b1 = params["gc1"]
    w2, b2 = params["gc2"]
    h_ref = jnp.maximum(adj @ (x @ w1) + b1, 0.0)
    out_ref = adj @ (h_ref @ w2) + b2

    assert out.shape == (num_nodes, emb_size)
    max_err = float(jnp.max(jnp.abs(out - out_ref)))
    assert jnp.allclose(out, out_ref, atol=1e-4, rtol=1e-4), max_err

    print("KERNEL_OK")
</pallas_src>

<mosaic_0001>
module attributes {stable_mosaic.version = 11 : i64} {
  func.func @_gcn_kernel(%arg0: memref<16x32xf32, #tpu.memory_space<vmem>>, %arg1: memref<16x16xf32, #tpu.memory_space<vmem>>, %arg2: memref<32x32xf32, #tpu.memory_space<vmem>>, %arg3: memref<1x32xf32, #tpu.memory_space<vmem>>, %arg4: memref<32x128xf32, #tpu.memory_space<vmem>>, %arg5: memref<1x128xf32, #tpu.memory_space<vmem>>, %arg6: memref<16x128xf32, #tpu.memory_space<vmem>>) attributes {dimension_semantics = [], scalar_prefetch = 0 : i64, scratch_operands = 0 : i64, tpu.core_type = #tpu.core_type<tc>} {
    %c0 = arith.constant 0 : index
    %c0_0 = arith.constant 0 : index
    %0 = vector.load %arg0[%c0, %c0_0] : memref<16x32xf32, #tpu.memory_space<vmem>>, vector<16x32xf32>
    %c0_1 = arith.constant 0 : index
    %c0_2 = arith.constant 0 : index
    %1 = vector.load %arg1[%c0_1, %c0_2] : memref<16x16xf32, #tpu.memory_space<vmem>>, vector<16x16xf32>
    %c0_3 = arith.constant 0 : index
    %c0_4 = arith.constant 0 : index
    %2 = vector.load %arg2[%c0_3, %c0_4] : memref<32x32xf32, #tpu.memory_space<vmem>>, vector<32x32xf32>
    %cst = arith.constant dense<0.000000e+00> : vector<16x32xf32>
    %3 = tpu.matmul %0, %2, %cst {dimension_numbers = #tpu.dot_dimension_numbers<[1], [0], [0], [1], [0, 0, 1, 1], [], []>} : vector<16x32xf32>, vector<32x32xf32>, vector<16x32xf32> -> vector<16x32xf32>
    %cst_5 = arith.constant dense<0.000000e+00> : vector<16x32xf32>
    %4 = tpu.matmul %1, %3, %cst_5 {dimension_numbers = #tpu.dot_dimension_numbers<[1], [0], [0], [1], [0, 0, 1, 1], [], []>} : vector<16x16xf32>, vector<16x32xf32>, vector<16x32xf32> -> vector<16x32xf32>
    %c0_6 = arith.constant 0 : index
    %c0_7 = arith.constant 0 : index
    %5 = vector.load %arg3[%c0_6, %c0_7] : memref<1x32xf32, #tpu.memory_space<vmem>>, vector<1x32xf32>
    %6 = vector.broadcast %5 : vector<1x32xf32> to vector<16x32xf32>
    %7 = arith.addf %4, %6 : vector<16x32xf32>
    %cst_8 = arith.constant 0.000000e+00 : f32
    %8 = vector.broadcast %cst_8 : f32 to vector<16x32xf32>
    %9 = arith.maximumf %7, %8 : vector<16x32xf32>
    %c0_9 = arith.constant 0 : index
    %c0_10 = arith.constant 0 : index
    %10 = vector.load %arg4[%c0_9, %c0_10] : memref<32x128xf32, #tpu.memory_space<vmem>>, vector<32x128xf32>
    %cst_11 = arith.constant dense<0.000000e+00> : vector<16x128xf32>
    %11 = tpu.matmul %9, %10, %cst_11 {dimension_numbers = #tpu.dot_dimension_numbers<[1], [0], [0], [1], [0, 0, 1, 1], [], []>} : vector<16x32xf32>, vector<32x128xf32>, vector<16x128xf32> -> vector<16x128xf32>
    %cst_12 = arith.constant dense<0.000000e+00> : vector<16x128xf32>
    %12 = tpu.matmul %1, %11, %cst_12 {dimension_numbers = #tpu.dot_dimension_numbers<[1], [0], [0], [1], [0, 0, 1, 1], [], []>} : vector<16x16xf32>, vector<16x128xf32>, vector<16x128xf32> -> vector<16x128xf32>
    %c0_13 = arith.constant 0 : index
    %c0_14 = arith.constant 0 : index
    %13 = vector.load %arg5[%c0_13, %c0_14] : memref<1x128xf32, #tpu.memory_space<vmem>>, vector<1x128xf32>
    %14 = vector.broadcast %13 : vector<1x128xf32> to vector<16x128xf32>
    %15 = arith.addf %12, %14 : vector<16x128xf32>
    %c0_15 = arith.constant 0 : index
    %c0_16 = arith.constant 0 : index
    %16 = vector.load %arg6[%c0_15, %c0_16] : memref<16x128xf32, #tpu.memory_space<vmem>>, vector<16x128xf32>
    tpu.vector_store %arg6[%c0_15, %c0_16], %15 {strides = array<i32>} : memref<16x128xf32, #tpu.memory_space<vmem>>, vector<16x128xf32>,
    return
  }
}

</mosaic_0001>

<llo_original>
// kernel: tpu_custom_call.1
$region0: #{tpu_custom_call.1}
  #allocation0 [shape = 'u32[]', space=smem, size = 0x4, offset = 0x4, fixed_abs, tag = 'smem constant byte address 0x4 - core index']
  #allocation1 [shape = 'u32[144,128]{1,0:T(1,128)}', space=vmem, size = 0x12000, scoped, tag = 'internal scratch']
  %s0 = inlined_call_operand.hbm [shape: f32[16,32], index: 0, kind: input, shape index: {}]
  %s1 = inlined_call_operand.hbm [shape: f32[16,16], index: 1, kind: input, shape index: {}]
  %s2 = inlined_call_operand.hbm [shape: f32[32,32], index: 2, kind: input, shape index: {}]
  %s3 = inlined_call_operand.vmem [shape: f32[1,32], index: 3, kind: input, shape index: {}]
  %s4 = inlined_call_operand.hbm [shape: f32[32,128], index: 4, kind: input, shape index: {}]
  %s5 = inlined_call_operand.vmem [shape: f32[1,128], index: 5, kind: input, shape index: {}]
  %s6 = inlined_call_operand.hbm [shape: f32[16,128], index: 6, kind: output, shape index: {}]
  %s7 = sld [smem:[#allocation0]]
  $region50: #{tpu_custom_call.1} parent=0
    _
  %s9 = ssub.s32 1, %s7
  %s10 = scalar_select 0, %s9, %s7
  $region1: #{tpu_custom_call.1} parent=0
    #allocation2 [shape = 'u8[8192]{0}', space=vmem, size = 0x2000, scoped, tag = 'input window, operand 0, single buffered']
    #allocation3 [shape = 's32[1]{0}', space=sflag, size = 0x4, scoped, tag = 'scoped memory for tpu_custom_call.1']
    #allocation4 [shape = 's32[1]{0}', space=sflag, size = 0x4, scoped, tag = 'scoped memory for tpu_custom_call.1']
    #allocation5 [shape = 'u8[8192]{0}', space=vmem, size = 0x2000, scoped, tag = 'input window, operand 1, single buffered']
    #allocation6 [shape = 's32[1]{0}', space=sflag, size = 0x4, scoped, tag = 'scoped memory for tpu_custom_call.1']
    #allocation7 [shape = 'u8[16384]{0}', space=vmem, size = 0x4000, scoped, tag = 'input window, operand 2, single buffered']
    #allocation8 [shape = 'u8[16384]{0}', space=vmem, size = 0x4000, scoped, tag = 'input window, operand 4, single buffered']
    #allocation9 [shape = 's32[1]{0}', space=sflag, size = 0x4, scoped, tag = 'scoped memory for tpu_custom_call.1']
    #allocation10 [shape = 'u8[8192]{0}', space=vmem, size = 0x2000, scoped, tag = 'output window, operand 0, single buffered']
    %11 = vsyncpa [#allocation3], 0
    %12 = vsyncpa [#allocation6], 0
    %13 = vsyncpa [#allocation9], 0
    %14 = vsyncpa [#allocation4], 0
    // Predicated region
    $region2: #{tpu_custom_call.1} parent=1 // pred_check
      _
    $region3: #{tpu_custom_call.1} parent=1 // pred_check_branch
      %16 = sbr.rel (0) target = $region5
    $region4: #{tpu_custom_call.1} parent=1 // pred_region
      %s18 = ssub.s32 256, 256
      %19 = vsyncadd [#allocation3], %s18
      %s20 = sshll.u32 [#allocation2], 4
      %s21 = int_to_ptr.vmem [resolvable:$true] %s20
      %26 = dma.hbm_to_vmem [thread:$0]  %s0, 256, %s21, [#allocation3], 128, 128, 8
    $region5: #{tpu_custom_call.1} parent=1 // pred_fallthru
      _
    // Predicated region
    $region6: #{tpu_custom_call.1} parent=1 // pred_check
      _
    $region7: #{tpu_custom_call.1} parent=1 // pred_check_branch
      %28 = sbr.rel (0) target = $region9
    $region8: #{tpu_custom_call.1} parent=1 // pred_region
      %s30 = ssub.s32 256, 256
      %31 = vsyncadd [#allocation6], %s30
      %s32 = sshll.u32 [#allocation5], 4
      %s33 = int_to_ptr.vmem [resolvable:$true] %s32
      %38 = dma.hbm_to_vmem [thread:$0]  %s1, 256, %s33, [#allocation6], 128, 128, 8
    $region9: #{tpu_custom_call.1} parent=1 // pred_fallthru
      _
    // Predicated region
    $region10: #{tpu_custom_call.1} parent=1 // pred_check
      _
    $region11: #{tpu_custom_call.1} parent=1 // pred_check_branch
      %40 = sbr.rel (0) target = $region13
    $region12: #{tpu_custom_call.1} parent=1 // pred_region
      %s42 = ssub.s32 512, 512
      %43 = vsyncadd [#allocation6], %s42
      %s44 = sshll.u32 [#allocation7], 4
      %s45 = int_to_ptr.vmem [resolvable:$true] %s44
      %50 = dma.hbm_to_vmem [thread:$0]  %s2, 512, %s45, [#allocation6], 128, 128, 8
    $region13: #{tpu_custom_call.1} parent=1 // pred_fallthru
      _
    // Predicated region
    $region14: #{tpu_custom_call.1} parent=1 // pred_check
      _
    $region15: #{tpu_custom_call.1} parent=1 // pred_check_branch
      %52 = sbr.rel (0) target = $region17
    $region16: #{tpu_custom_call.1} parent=1 // pred_region
      _
    $region17: #{tpu_custom_call.1} parent=1 // pred_fallthru
      _
    // Predicated region
    $region18: #{tpu_custom_call.1} parent=1 // pred_check
      _
    $region19: #{tpu_custom_call.1} parent=1 // pred_check_branch
      %54 = sbr.rel (0) target = $region21
    $region20: #{tpu_custom_call.1} parent=1 // pred_region
      %s56 = ssub.s32 512, 512
      %57 = vsyncadd [#allocation9], %s56
      %s58 = sshll.u32 [#allocation8], 4
      %s59 = int_to_ptr.vmem [resolvable:$true] %s58
      %64 = dma.hbm_to_vmem [thread:$0]  %s4, 512, %s59, [#allocation9], 128, 128, 8
    $region21: #{tpu_custom_call.1} parent=1 // pred_fallthru
      _
    // Predicated region
    $region22: #{tpu_custom_call.1} parent=1 // pred_check
      _
    $region23: #{tpu_custom_call.1} parent=1 // pred_check_branch
      %66 = sbr.rel (0) target = $region25
    $region24: #{tpu_custom_call.1} parent=1 // pred_region
      _
    $region25: #{tpu_custom_call.1} parent=1 // pred_fallthru
      _
    // Predicated region
    $region26: #{tpu_custom_call.1} parent=1 // pred_check
      _
    $region27: #{tpu_custom_call.1} parent=1 // pred_check_branch
      %68 = sbr.rel (0) target = $region29
    $region28: #{tpu_custom_call.1} parent=1 // pred_region
      %69 = dma.done [#allocation3], 256
    $region29: #{tpu_custom_call.1} parent=1 // pred_fallthru
      _
    // Predicated region
    $region30: #{tpu_custom_call.1} parent=1 // pred_check
      _
    $region31: #{tpu_custom_call.1} parent=1 // pred_check_branch
      %71 = sbr.rel (0) target = $region33
    $region32: #{tpu_custom_call.1} parent=1 // pred_region
      %72 = dma.done [#allocation6], 256
    $region33: #{tpu_custom_call.1} parent=1 // pred_fallthru
      _
    // Predicated region
    $region34: #{tpu_custom_call.1} parent=1 // pred_check
      _
    $region35: #{tpu_custom_call.1} parent=1 // pred_check_branch
      %74 = sbr.rel (0) target = $region37
    $region36: #{tpu_custom_call.1} parent=1 // pred_region
      %75 = dma.done [#allocation6], 512
    $region37: #{tpu_custom_call.1} parent=1 // pred_fallthru
      _
    // Predicated region
    $region38: #{tpu_custom_call.1} parent=1 // pred_check
      _
    $region39: #{tpu_custom_call.1} parent=1 // pred_check_branch
      %77 = sbr.rel (0) target = $region41
    $region40: #{tpu_custom_call.1} parent=1 // pred_region
      %78 = dma.done [#allocation9], 512
    $region41: #{tpu_custom_call.1} parent=1 // pred_fallthru
      _
    %v79 = vld [vmem:[#allocation2] sm:$0xff]
    %v80 = vld [vmem:[#allocation2 + $0x8] sm:$0xff]
    %v81 = vld [vmem:[#allocation5] sm:$0xff]
    %v82 = vld [vmem:[#allocation5 + $0x8] sm:$0xff]
    %v83 = vld [vmem:[#allocation7] sm:$0xff]
    %v84 = vld [vmem:[#allocation7 + $0x8] sm:$0xff]
    %v85 = vld [vmem:[#allocation7 + $0x10] sm:$0xff]
    %v86 = vld [vmem:[#allocation7 + $0x18] sm:$0xff]
    %vm87 = vcmask 261120
    %v89 = vsel %vm87, %v79, 0
    %v92 = vsel %vm87, %v80, 0
    %94 = vmatprep.subr.mxu0 0.0
    %95 = vmatpush1.msra.mxu0 %v83
    %96 = vmatprep.subr.mxu0 0.0
    %97 = vmatpush1.msra.mxu0 %v84
    %98 = vmatprep.subr.mxu0 0.0
    %99 = vmatpush1.msra.mxu0 %v85
    %100 = vmatprep.subr.mxu0 0.0
    %101 = vmatpush1.msra.mxu0 %v86
    %102 = vmatprep.subr.mxu0 0.0
    %103 = vmatpush1.msra.mxu0 0.0
    %104 = vmatprep.subr.mxu0 0.0
    %105 = vmatpush1.msra.mxu0 0.0
    %106 = vmatprep.subr.mxu0 0.0
    %107 = vmatpush1.msra.mxu0 0.0
    %108 = vmatprep.subr.mxu0 0.0
    %109 = vmatpush1.msra.mxu0 0.0
    %110 = vmatprep.subr.mxu0 0.0
    %111 = vmatpush1.msra.mxu0 0.0
    %112 = vmatprep.subr.mxu0 0.0
    %113 = vmatpush1.msra.mxu0 0.0
    %114 = vmatprep.subr.mxu0 0.0
    %115 = vmatpush1.msra.mxu0 0.0
    %116 = vmatprep.subr.mxu0 0.0
    %117 = vmatpush1.msra.mxu0 0.0
    %118 = vmatprep.subr.mxu0 0.0
    %119 = vmatpush1.msra.mxu0 0.0
    %120 = vmatprep.subr.mxu0 0.0
    %121 = vmatpush1.msra.mxu0 0.0
    %122 = vmatprep.subr.mxu0 0.0
    %123 = vmatpush1.msra.mxu0 0.0
    %124 = vmatprep.subr.mxu0 0.0
    %125 = vmatpush1.msra.mxu0 0.0
    %126 = vmatprep.subr.mxu0 0.0
    %127 = vmatpush1.msra.mxu0 0.0
    %128 = vmatprep.subr.mxu0 0.0
    %129 = vmatpush1.msra.mxu0 0.0
    %130 = vmatprep.subr.mxu0 0.0
    %131 = vmatpush1.msra.mxu0 0.0
    %132 = vmatprep.subr.mxu0 0.0
    %133 = vmatpush1.msra.mxu0 0.0
    %134 = vmatprep.subr.mxu0 0.0
    %135 = vmatpush1.msra.mxu0 0.0
    %136 = vmatprep.subr.mxu0 0.0
    %137 = vmatpush1.msra.mxu0 0.0
    %138 = vmatprep.subr.mxu0 0.0
    %139 = vmatpush1.msra.mxu0 0.0
    %140 = vmatprep.subr.mxu0 0.0
    %141 = vmatpush1.msra.mxu0 0.0
    %142 = vmatprep.subr.mxu0 0.0
    %143 = vmatpush1.msra.mxu0 0.0
    %144 = vmatprep.subr.mxu0 0.0
    %145 = vmatpush1.msra.mxu0 0.0
    %146 = vmatprep.subr.mxu0 0.0
    %147 = vmatpush1.msra.mxu0 0.0
    %148 = vmatprep.subr.mxu0 0.0
    %149 = vmatpush1.msra.mxu0 0.0
    %150 = vmatprep.subr.mxu0 0.0
    %151 = vmatpush1.msra.mxu0 0.0
    %152 = vmatprep.subr.mxu0 0.0
    %153 = vmatpush1.msra.mxu0 0.0
    %154 = vmatprep.subr.mxu0 0.0
    %155 = vmatpush1.msra.mxu0 0.0
    %156 = vmatprep.subr.mxu0 0.0
    %157 = vmatpush1.msra.mxu0 0.0
    %158 = vmatprep.mubr.f32.mxu0 0.0
    %159 = vmatmul.mubr.f32.gmra.mrb[0].mxu0 %v89
    %v160 = vpop.f32.mrb[0].mxu0
    %v161 = vadd.f32 0.0, %v160
    %v162 = vpop.f32.mrb[0].mxu0
    %163 = vmatprep.mubr.f32.mxu0 0.0
    %164 = vmatmul.mubr.f32.gmra.mrb[0].mxu0 %v92
    %v165 = vpop.f32.mrb[0].mxu0
    %v166 = vadd.f32 0.0, %v165
    %v167 = vpop.f32.mrb[0].mxu0
    %168 = vdwg.mxu0
    %v169 = vld [vmem:[%s3] sm:$0x1]
    %v171 = vlaneseq
    %v172 = vshrl.u32 %v171, 7
    %v173 = vsub.s32 0, %v172
    %v174 = vrot.slane %v169, %v173
    %vm176 = vcmask 130048
    %v178 = vsel %vm176, %v81, 0
    %v181 = vsel %vm176, %v82, 0
    %183 = vmatprep.subr.mxu0 0.0
    %184 = vmatpush1.msra.mxu0 %v161
    %185 = vmatprep.subr.mxu0 0.0
    %186 = vmatpush1.msra.mxu0 %v166
    %187 = vmatprep.subr.mxu0 0.0
    %188 = vmatpush1.msra.mxu0 0.0
    %189 = vmatprep.subr.mxu0 0.0
    %190 = vmatpush1.msra.mxu0 0.0
    %191 = vmatprep.subr.mxu0 0.0
    %192 = vmatpush1.msra.mxu0 0.0
    %193 = vmatprep.subr.mxu0 0.0
    %194 = vmatpush1.msra.mxu0 0.0
    %195 = vmatprep.subr.mxu0 0.0
    %196 = vmatpush1.msra.mxu0 0.0
    %197 = vmatprep.subr.mxu0 0.0
    %198 = vmatpush1.msra.mxu0 0.0
    %199 = vmatprep.subr.mxu0 0.0
    %200 = vmatpush1.msra.mxu0 0.0
    %201 = vmatprep.subr.mxu0 0.0
    %202 = vmatpush1.msra.mxu0 0.0
    %203 = vmatprep.subr.mxu0 0.0
    %204 = vmatpush1.msra.mxu0 0.0
    %205 = vmatprep.subr.mxu0 0.0
    %206 = vmatpush1.msra.mxu0 0.0
    %207 = vmatprep.subr.mxu0 0.0
    %208 = vmatpush1.msra.mxu0 0.0
    %209 = vmatprep.subr.mxu0 0.0
    %210 = vmatpush1.msra.mxu0 0.0
    %211 = vmatprep.subr.mxu0 0.0
    %212 = vmatpush1.msra.mxu0 0.0
    %213 = vmatprep.subr.mxu0 0.0
    %214 = vmatpush1.msra.mxu0 0.0
    %215 = vmatprep.subr.mxu0 0.0
    %216 = vmatpush1.msra.mxu0 0.0
    %217 = vmatprep.subr.mxu0 0.0
    %218 = vmatpush1.msra.mxu0 0.0
    %219 = vmatprep.subr.mxu0 0.0
    %220 = vmatpush1.msra.mxu0 0.0
    %221 = vmatprep.subr.mxu0 0.0
    %222 = vmatpush1.msra.mxu0 0.0
    %223 = vmatprep.subr.mxu0 0.0
    %224 = vmatpush1.msra.mxu0 0.0
    %225 = vmatprep.subr.mxu0 0.0
    %226 = vmatpush1.msra.mxu0 0.0
    %227 = vmatprep.subr.mxu0 0.0
    %228 = vmatpush1.msra.mxu0 0.0
    %229 = vmatprep.subr.mxu0 0.0
    %230 = vmatpush1.msra.mxu0 0.0
    %231 = vmatprep.subr.mxu0 0.0
    %232 = vmatpush1.msra.mxu0 0.0
    %233 = vmatprep.subr.mxu0 0.0
    %234 = vmatpush1.msra.mxu0 0.0
    %235 = vmatprep.subr.mxu0 0.0
    %236 = vmatpush1.msra.mxu0 0.0
    %237 = vmatprep.subr.mxu0 0.0
    %238 = vmatpush1.msra.mxu0 0.0
    %239 = vmatprep.subr.mxu0 0.0
    %240 = vmatpush1.msra.mxu0 0.0
    %241 = vmatprep.subr.mxu0 0.0
    %242 = vmatpush1.msra.mxu0 0.0
    %243 = vmatprep.subr.mxu0 0.0
    %244 = vmatpush1.msra.mxu0 0.0
    %245 = vmatprep.subr.mxu0 0.0
    %246 = vmatpush1.msra.mxu0 0.0
    %247 = vmatprep.mubr.f32.mxu0 0.0
    %248 = vmatmul.mubr.f32.gmra.mrb[0].mxu0 %v178
    %v249 = vpop.f32.mrb[0].mxu0
    %v250 = vadd.f32 %v174, %v249
    %v251 = vpop.f32.mrb[0].mxu0
    %252 = vmatprep.mubr.f32.mxu0 0.0
    %253 = vmatmul.mubr.f32.gmra.mrb[0].mxu0 %v181
    %v254 = vpop.f32.mrb[0].mxu0
    %v255 = vadd.f32 %v174, %v254
    %v256 = vpop.f32.mrb[0].mxu0
    %257 = vdwg.mxu0
    %v258 = vmax.f32 %v250, 0.0
    %v259 = vmax.f32 %v255, 0.0
    %v260 = vld [vmem:[#allocation8] sm:$0xff]
    %v261 = vld [vmem:[#allocation8 + $0x8] sm:$0xff]
    %v262 = vld [vmem:[#allocation8 + $0x10] sm:$0xff]
    %v263 = vld [vmem:[#allocation8 + $0x18] sm:$0xff]
    %v265 = vsel %vm87, %v258, 0
    %v268 = vsel %vm87, %v259, 0
    %270 = vmatprep.subr.mxu0 0.0
    %271 = vmatpush1.msra.mxu0 %v260
    %272 = vmatprep.subr.mxu0 0.0
    %273 = vmatpush1.msra.mxu0 %v261
    %274 = vmatprep.subr.mxu0 0.0
    %275 = vmatpush1.msra.mxu0 %v262
    %276 = vmatprep.subr.mxu0 0.0
    %277 = vmatpush1.msra.mxu0 %v263
    %278 = vmatprep.subr.mxu0 0.0
    %279 = vmatpush1.msra.mxu0 0.0
    %280 = vmatprep.subr.mxu0 0.0
    %281 = vmatpush1.msra.mxu0 0.0
    %282 = vmatprep.subr.mxu0 0.0
    %283 = vmatpush1.msra.mxu0 0.0
    %284 = vmatprep.subr.mxu0 0.0
    %285 = vmatpush1.msra.mxu0 0.0
    %286 = vmatprep.subr.mxu0 0.0
    %287 = vmatpush1.msra.mxu0 0.0
    %288 = vmatprep.subr.mxu0 0.0
    %289 = vmatpush1.msra.mxu0 0.0
    %290 = vmatprep.subr.mxu0 0.0
    %291 = vmatpush1.msra.mxu0 0.0
    %292 = vmatprep.subr.mxu0 0.0
    %293 = vmatpush1.msra.mxu0 0.0
    %294 = vmatprep.subr.mxu0 0.0
    %295 = vmatpush1.msra.mxu0 0.0
    %296 = vmatprep.subr.mxu0 0.0
    %297 = vmatpush1.msra.mxu0 0.0
    %298 = vmatprep.subr.mxu0 0.0
    %299 = vmatpush1.msra.mxu0 0.0
    %300 = vmatprep.subr.mxu0 0.0
    %301 = vmatpush1.msra.mxu0 0.0
    %302 = vmatprep.subr.mxu0 0.0
    %303 = vmatpush1.msra.mxu0 0.0
    %304 = vmatprep.subr.mxu0 0.0
    %305 = vmatpush1.msra.mxu0 0.0
    %306 = vmatprep.subr.mxu0 0.0
    %307 = vmatpush1.msra.mxu0 0.0
    %308 = vmatprep.subr.mxu0 0.0
    %309 = vmatpush1.msra.mxu0 0.0
    %310 = vmatprep.subr.mxu0 0.0
    %311 = vmatpush1.msra.mxu0 0.0
    %312 = vmatprep.subr.mxu0 0.0
    %313 = vmatpush1.msra.mxu0 0.0
    %314 = vmatprep.subr.mxu0 0.0
    %315 = vmatpush1.msra.mxu0 0.0
    %316 = vmatprep.subr.mxu0 0.0
    %317 = vmatpush1.msra.mxu0 0.0
    %318 = vmatprep.subr.mxu0 0.0
    %319 = vmatpush1.msra.mxu0 0.0
    %320 = vmatprep.subr.mxu0 0.0
    %321 = vmatpush1.msra.mxu0 0.0
    %322 = vmatprep.subr.mxu0 0.0
    %323 = vmatpush1.msra.mxu0 0.0
    %324 = vmatprep.subr.mxu0 0.0
    %325 = vmatpush1.msra.mxu0 0.0
    %326 = vmatprep.subr.mxu0 0.0
    %327 = vmatpush1.msra.mxu0 0.0
    %328 = vmatprep.subr.mxu0 0.0
    %329 = vmatpush1.msra.mxu0 0.0
    %330 = vmatprep.subr.mxu0 0.0
    %331 = vmatpush1.msra.mxu0 0.0
    %332 = vmatprep.subr.mxu0 0.0
    %333 = vmatpush1.msra.mxu0 0.0
    %334 = vmatprep.mubr.f32.mxu0 0.0
    %335 = vmatmul.mubr.f32.gmra.mrb[0].mxu0 %v265
    %v336 = vpop.f32.mrb[0].mxu0
    %v337 = vadd.f32 0.0, %v336
    %v338 = vpop.f32.mrb[0].mxu0
    %339 = vmatprep.mubr.f32.mxu0 0.0
    %340 = vmatmul.mubr.f32.gmra.mrb[0].mxu0 %v268
    %v341 = vpop.f32.mrb[0].mxu0
    %v342 = vadd.f32 0.0, %v341
    %v343 = vpop.f32.mrb[0].mxu0
    %344 = vdwg.mxu0
    %v345 = vld [vmem:[%s5] sm:$0x1]
    %v347 = vlaneseq
    %v348 = vshrl.u32 %v347, 7
    %v349 = vsub.s32 0, %v348
    %v350 = vrot.slane %v345, %v349
    %352 = vmatprep.subr.mxu0 0.0
    %353 = vmatpush1.msra.mxu0 %v337
    %354 = vmatprep.subr.mxu0 0.0
    %355 = vmatpush1.msra.mxu0 %v342
    %356 = vmatprep.subr.mxu0 0.0
    %357 = vmatpush1.msra.mxu0 0.0
    %358 = vmatprep.subr.mxu0 0.0
    %359 = vmatpush1.msra.mxu0 0.0
    %360 = vmatprep.subr.mxu0 0.0
    %361 = vmatpush1.msra.mxu0 0.0
    %362 = vmatprep.subr.mxu0 0.0
    %363 = vmatpush1.msra.mxu0 0.0
    %364 = vmatprep.subr.mxu0 0.0
    %365 = vmatpush1.msra.mxu0 0.0
    %366 = vmatprep.subr.mxu0 0.0
    %367 = vmatpush1.msra.mxu0 0.0
    %368 = vmatprep.subr.mxu0 0.0
    %369 = vmatpush1.msra.mxu0 0.0
    %370 = vmatprep.subr.mxu0 0.0
    %371 = vmatpush1.msra.mxu0 0.0
    %372 = vmatprep.subr.mxu0 0.0
    %373 = vmatpush1.msra.mxu0 0.0
    %374 = vmatprep.subr.mxu0 0.0
    %375 = vmatpush1.msra.mxu0 0.0
    %376 = vmatprep.subr.mxu0 0.0
    %377 = vmatpush1.msra.mxu0 0.0
    %378 = vmatprep.subr.mxu0 0.0
    %379 = vmatpush1.msra.mxu0 0.0
    %380 = vmatprep.subr.mxu0 0.0
    %381 = vmatpush1.msra.mxu0 0.0
    %382 = vmatprep.subr.mxu0 0.0
    %383 = vmatpush1.msra.mxu0 0.0
    %384 = vmatprep.subr.mxu0 0.0
    %385 = vmatpush1.msra.mxu0 0.0
    %386 = vmatprep.subr.mxu0 0.0
    %387 = vmatpush1.msra.mxu0 0.0
    %388 = vmatprep.subr.mxu0 0.0
    %389 = vmatpush1.msra.mxu0 0.0
    %390 = vmatprep.subr.mxu0 0.0
    %391 = vmatpush1.msra.mxu0 0.0
    %392 = vmatprep.subr.mxu0 0.0
    %393 = vmatpush1.msra.mxu0 0.0
    %394 = vmatprep.subr.mxu0 0.0
    %395 = vmatpush1.msra.mxu0 0.0
    %396 = vmatprep.subr.mxu0 0.0
    %397 = vmatpush1.msra.mxu0 0.0
    %398 = vmatprep.subr.mxu0 0.0
    %399 = vmatpush1.msra.mxu0 0.0
    %400 = vmatprep.subr.mxu0 0.0
    %401 = vmatpush1.msra.mxu0 0.0
    %402 = vmatprep.subr.mxu0 0.0
    %403 = vmatpush1.msra.mxu0 0.0
    %404 = vmatprep.subr.mxu0 0.0
    %405 = vmatpush1.msra.mxu0 0.0
    %406 = vmatprep.subr.mxu0 0.0
    %407 = vmatpush1.msra.mxu0 0.0
    %408 = vmatprep.subr.mxu0 0.0
    %409 = vmatpush1.msra.mxu0 0.0
    %410 = vmatprep.subr.mxu0 0.0
    %411 = vmatpush1.msra.mxu0 0.0
    %412 = vmatprep.subr.mxu0 0.0
    %413 = vmatpush1.msra.mxu0 0.0
    %414 = vmatprep.subr.mxu0 0.0
    %415 = vmatpush1.msra.mxu0 0.0
    %416 = vmatprep.mubr.f32.mxu0 0.0
    %417 = vmatmul.mubr.f32.gmra.mrb[0].mxu0 %v178
    %v418 = vpop.f32.mrb[0].mxu0
    %v419 = vadd.f32 %v350, %v418
    %v420 = vpop.f32.mrb[0].mxu0
    %421 = vmatprep.mubr.f32.mxu0 0.0
    %422 = vmatmul.mubr.f32.gmra.mrb[0].mxu0 %v181
    %v423 = vpop.f32.mrb[0].mxu0
    %v424 = vadd.f32 %v350, %v423
    %v425 = vpop.f32.mrb[0].mxu0
    %426 = vdwg.mxu0
    %427 = vst [vmem:[#allocation10] sm:$0xff] %v419
    %428 = vst [vmem:[#allocation10 + $0x8] sm:$0xff] %v424
    // Predicated region
    $region42: #{tpu_custom_call.1} parent=1 // pred_check
      _
    $region43: #{tpu_custom_call.1} parent=1 // pred_check_branch
      %430 = sbr.rel (0) target = $region45
    $region44: #{tpu_custom_call.1} parent=1 // pred_region
      %s432 = ssub.s32 256, 256
      %433 = vsyncadd [#allocation4], %s432
      %s434 = sshll.u32 [#allocation10], 4
      %s435 = int_to_ptr.vmem [resolvable:$true] %s434
      %440 = dma.vmem_to_hbm [thread:$0]  %s435, 256, %s6, [#allocation4], 128, 128, 8
    $region45: #{tpu_custom_call.1} parent=1 // pred_fallthru
      _
    // Predicated region
    $region46: #{tpu_custom_call.1} parent=1 // pred_check
      _
    $region47: #{tpu_custom_call.1} parent=1 // pred_check_branch
      %442 = sbr.rel (0) target = $region49
    $region48: #{tpu_custom_call.1} parent=1 // pred_region
      %443 = dma.done [#allocation4], 256
    $region49: #{tpu_custom_call.1} parent=1 // pred_fallthru
      _
    %444 = vsyncpa [#allocation3], 1
    %445 = vsyncpa [#allocation6], 1
    %446 = vsyncpa [#allocation9], 1
    %447 = vsyncpa [#allocation4], 1

</llo_original>
